<compile_context>
chip_gen: v7x
topology: tpu7x:2x2x1
jax: 0.10.0
libtpu: 0.0.40
codegen_flags: <defaults>
</compile_context>

<pallas_src>
import functools

import numpy as np
import jax
import jax.numpy as jnp
from jax.experimental import pallas as pl
from jax.experimental.pallas import tpu as pltpu


def _round_up(x, m):
    return ((x + m - 1) // m) * m


def _cdiv(a, b):
    return -(-a // b)


def _choose_tiling(batch, max_tb=2048):
    """(tile_rows, padded_batch).  One step for small batches; an even number
    of steps (v7x megacore) with tiles <= max_tb rows for large batches."""
    b8 = _round_up(max(batch, 8), 8)
    if b8 <= 1024:
        return b8, b8
    steps = 2 * _cdiv(_cdiv(b8, 2), max_tb)
    tb = _round_up(_cdiv(b8, steps), 8)
    return tb, tb * steps


# ----------------------------- Pallas kernel --------------------------------
def _ltv_kernel(xin_ref, whead_ref, tbl_ref, w2_ref, out_ref, *, n_cat, id_col0):
    tb = xin_ref.shape[0]
    v_pad = tbl_ref.shape[0]

    xin = xin_ref[...]                                          # [tb, 13] f32
    ids = xin[:, id_col0:id_col0 + n_cat].astype(jnp.int32)     # [tb, n_cat]

    # Multi-hot over the concatenated vocab.  Global ids are disjoint across
    # features (vocab offsets added in the wrapper), so boolean OR == sum and
    # we pay a single bool->f32 cast.
    lane = jax.lax.broadcasted_iota(jnp.int32, (tb, v_pad), 1)
    hot = lane == ids[:, 0:1]
    for i in range(1, n_cat):                                   # small, unrolled
        hot = jnp.logical_or(hot, lane == ids[:, i:i + 1])
    multihot = hot.astype(jnp.float32)

    # Layer 1: folded embedding tables (one multihot matmul) + numeric Linear
    # and b1 (folded into `whead`; the constant-1 input column carries b1, the
    # id columns hit all-zero rows of `whead` so they contribute nothing).
    h = jnp.dot(multihot, tbl_ref[...], preferred_element_type=jnp.float32)
    h = h + jnp.dot(xin, whead_ref[...], preferred_element_type=jnp.float32)
    h = jnp.maximum(h, 0.0)                                     # ReLU
    # TODO(synk): nn.Dropout omitted (eval-mode identity).

    # Layer 2; b2 is folded in via the reserved always-1 hidden lane
    # (last hidden lane == 1 after ReLU, matching row of W2 == b2).
    out_ref[...] = jnp.dot(h, w2_ref[...], preferred_element_type=jnp.float32)


def ltv_forward_pallas(xin, fused, *, n_cat, num_feat, tile_rows=None,
                       max_tb=2048):
    """xin: [B, num_feat + 1 + n_cat] f32 packed input  ->  [B, 3] f32."""
    B, head_w = xin.shape
    table, whead, w2 = fused["table"], fused["whead"], fused["w2"]
    v_pad, h_pad = table.shape
    out_w = w2.shape[1]

    if tile_rows is None:
        tb, b_pad = _choose_tiling(B, max_tb)
    else:
        tb = _round_up(tile_rows, 8)
        b_pad = _round_up(max(B, tb), tb)
    if b_pad != B:
        xin = jnp.pad(xin, ((0, b_pad - B), (0, 0)))

    kernel = functools.partial(_ltv_kernel, n_cat=n_cat, id_col0=num_feat + 1)
    out = pl.pallas_call(
        kernel,
        out_shape=jax.ShapeDtypeStruct((b_pad, out_w), jnp.float32),
        grid_spec=pltpu.PrefetchScalarGridSpec(
            num_scalar_prefetch=0,
            grid=(b_pad // tb,),
            in_specs=[
                pl.BlockSpec((tb, head_w), lambda i: (i, 0)),      # packed rows (stream)
                pl.BlockSpec((head_w, h_pad), lambda i: (0, 0)),   # fused head (resident)
                pl.BlockSpec((v_pad, h_pad), lambda i: (0, 0)),    # folded tables (resident)
                pl.BlockSpec((h_pad, out_w), lambda i: (0, 0)),    # W2 + b2 row (resident)
            ],
            out_specs=pl.BlockSpec((tb, out_w), lambda i: (i, 0)),
        ),
        compiler_params=pltpu.CompilerParams(
            dimension_semantics=("parallel",),
            vmem_limit_bytes=32 * 1024 * 1024),
    )(xin, whead, table, w2)
    return out[:B, :3]


# ------------------------------ JAX glue -------------------------------------
@functools.partial(jax.jit, static_argnames=("tile_rows", "max_tb"))
def single_ltv_forward(x_cat, x_num, fused, tile_rows=None, max_tb=2048):
    B, n_cat = x_cat.shape
    num_feat = x_num.shape[1]
    # One merged streamed input: [x_num (num_feat) | 1.0 | global ids (n_cat)].
    ids_f = x_cat.astype(jnp.float32) + fused["vocab_offsets"][None, :]
    xin = jnp.concatenate(
        [x_num.astype(jnp.float32), jnp.ones((B, 1), jnp.float32), ids_f],
        axis=1)
    return ltv_forward_pallas(xin, fused, n_cat=n_cat, num_feat=num_feat,
                              tile_rows=tile_rows, max_tb=max_tb)


def single_ltv_reference(x_cat, x_num, emb_tables, params):
    """Pure-JAX reference matching the PyTorch forward (eval mode)."""
    P = jax.lax.Precision.HIGHEST
    emb = jnp.concatenate([jnp.take(t, x_cat[:, i], axis=0)
                           for i, t in enumerate(emb_tables)], axis=1)
    num_out = jnp.dot(x_num, params["w_num"].T, precision=P) + params["b_num"]
    x = jnp.concatenate([emb, num_out], axis=1)
    w1 = jnp.concatenate([params["w1_emb"], params["w1_num"]], axis=1)
    h = jnp.maximum(jnp.dot(x, w1.T, precision=P) + params["b1"], 0.0)
    return jnp.dot(h, params["w2"].T, precision=P) + params["b2"]


# --------------------------- parameter construction --------------------------
def make_params(key, cat_feat_sizes, num_feat_size):
    emb_dims = [min(50, (s + 1) // 2) for s in cat_feat_sizes]
    total_emb = sum(emb_dims)
    numeric_dim = 10 * num_feat_size
    hidden = (total_emb + numeric_dim) // 2

    keys = jax.random.split(key, len(cat_feat_sizes) + 6)
    emb_tables = tuple(
        jax.random.normal(keys[i], (s, d), dtype=jnp.float32) * 0.1
        for i, (s, d) in enumerate(zip(cat_feat_sizes, emb_dims)))
    k = len(cat_feat_sizes)
    w_num = jax.random.normal(keys[k + 0], (numeric_dim, num_feat_size),
                              dtype=jnp.float32) * 0.1
    b_num = jax.random.normal(keys[k + 1], (1, numeric_dim),
                              dtype=jnp.float32) * 0.1
    w1 = jax.random.normal(keys[k + 2], (hidden, total_emb + numeric_dim),
                           dtype=jnp.float32) * 0.1
    b1 = jax.random.normal(keys[k + 3], (1, hidden), dtype=jnp.float32) * 0.1
    w2 = jax.random.normal(keys[k + 4], (3, hidden), dtype=jnp.float32) * 0.1
    b2 = jax.random.normal(keys[k + 5], (1, 3), dtype=jnp.float32) * 0.1

    params = dict(
        w_num=w_num, b_num=b_num,
        w1_emb=w1[:, :total_emb],   # W1 split along its input axis
        w1_num=w1[:, total_emb:],
        b1=b1, w2=w2, b2=b2)
    return emb_tables, params, emb_dims


def prepare_fused_params(emb_tables, params, emb_dims, cat_feat_sizes):
    """Host-side one-time folding / padding (float64 numpy, exact algebra)."""
    hidden = params["b1"].shape[1]
    num_feat = params["w_num"].shape[1]
    n_cat = len(cat_feat_sizes)
    h_pad = _round_up(hidden + 1, 128)          # >=1 spare lane for the b2 fold
    out_w = 8
    head_w = num_feat + 1 + n_cat               # [x_num | 1 | ids]

    w_num = np.asarray(params["w_num"], np.float64)
    b_num = np.asarray(params["b_num"], np.float64)
    w1_emb = np.asarray(params["w1_emb"], np.float64)
    w1_num = np.asarray(params["w1_num"], np.float64)
    b1 = np.asarray(params["b1"], np.float64)
    w2 = np.asarray(params["w2"], np.float64)
    b2 = np.asarray(params["b2"], np.float64)

    # Fold the numeric Linear into layer 1.
    w_num_fused = (w1_num @ w_num).T                       # [num_feat, hidden]
    b1_fused = b1 + b_num @ w1_num.T                       # [1, hidden]

    # Fold each embedding table into layer 1 and stack them.
    offs = np.concatenate([[0], np.cumsum(emb_dims)]).astype(np.int64)
    folded = [np.asarray(t, np.float64) @ w1_emb[:, offs[i]:offs[i + 1]].T
              for i, t in enumerate(emb_tables)]
    big_tbl = np.concatenate(folded, axis=0)               # [V, hidden]
    V = big_tbl.shape[0]
    v_pad = _round_up(V, 8)

    table_pad = np.zeros((v_pad, h_pad), np.float32)
    table_pad[:V, :hidden] = big_tbl

    whead = np.zeros((head_w, h_pad), np.float32)
    whead[:num_feat, :hidden] = w_num_fused
    whead[num_feat, :hidden] = b1_fused[0]                 # b1 via the 1-column
    whead[num_feat, h_pad - 1] = 1.0                       # always-1 hidden lane
    # rows num_feat+1.. (id columns of the packed input) stay zero.

    w2_pad = np.zeros((h_pad, out_w), np.float32)
    w2_pad[:hidden, :3] = w2.T
    w2_pad[h_pad - 1, :3] = b2[0]                          # b2 via the 1-lane

    vocab_offsets = np.concatenate([[0], np.cumsum(cat_feat_sizes)[:-1]])
    return dict(
        table=jnp.asarray(table_pad),
        whead=jnp.asarray(whead),
        w2=jnp.asarray(w2_pad),
        vocab_offsets=jnp.asarray(vocab_offsets, dtype=jnp.float32))


# ----------------------------------- main ------------------------------------
if __name__ == "__main__":
    key = jax.random.PRNGKey(0)

    # Small synthetic config consistent with the module's __init__.
    cat_feat_sizes = [7, 11, 13, 20]     # 4 categorical features
    num_feat_size = 8                    # numeric_feature_size
    B = 48                               # batch

    k_param, k_cat, k_num = jax.random.split(key, 3)
    emb_tables, params, emb_dims = make_params(k_param, cat_feat_sizes,
                                               num_feat_size)
    fused = prepare_fused_params(emb_tables, params, emb_dims, cat_feat_sizes)

    x_cat = jnp.stack(
        [jax.random.randint(jax.random.fold_in(k_cat, i), (B,), 0, s,
                            dtype=jnp.int32)
         for i, s in enumerate(cat_feat_sizes)],
        axis=1)                                          # [B, 4] int32
    x_num = jax.random.normal(k_num, (B, num_feat_size), dtype=jnp.float32)

    # Default tiling: whole (small) batch in one grid step.
    out = jax.block_until_ready(single_ltv_forward(x_cat, x_num, fused))
    # Forced multi-step grid: exercises batch padding + pipelining.
    out_tiled = jax.block_until_ready(
        single_ltv_forward(x_cat, x_num, fused, tile_rows=32))

    ref = single_ltv_reference(x_cat, x_num, emb_tables, params)
    assert out.shape == (B, 3)
    # Tolerance covers MXU f32-emulation differences across TPU generations;
    # typical observed error from the host-side folding alone is ~1e-6.
    assert jnp.allclose(out, ref, atol=2e-3, rtol=2e-3), "mismatch vs reference"
    assert jnp.allclose(out_tiled, ref, atol=2e-3, rtol=2e-3), "tiled mismatch"

    print("KERNEL_OK")
</pallas_src>

<mosaic_0001>
module attributes {stable_mosaic.version = 11 : i64} {
  func.func @_ltv_kernel(%arg0: i32, %arg1: memref<48x13xf32, #tpu.memory_space<vmem>>, %arg2: memref<13x128xf32, #tpu.memory_space<vmem>>, %arg3: memref<56x128xf32, #tpu.memory_space<vmem>>, %arg4: memref<128x8xf32, #tpu.memory_space<vmem>>, %arg5: memref<48x8xf32, #tpu.memory_space<vmem>>) attributes {dimension_semantics = [#tpu.dimension_semantics<parallel>], iteration_bounds = array<i64: 1>, scalar_prefetch = 0 : i64, scratch_operands = 0 : i64, tpu.core_type = #tpu.core_type<tc>, window_params = [{transform_indices = @transform_0, window_bounds = array<i64: 48, 13>}, {pipeline_mode = #tpu.pipeline_mode<synchronous>, transform_indices = @transform_1, window_bounds = array<i64: 13, 128>}, {pipeline_mode = #tpu.pipeline_mode<synchronous>, transform_indices = @transform_2, window_bounds = array<i64: 56, 128>}, {pipeline_mode = #tpu.pipeline_mode<synchronous>, transform_indices = @transform_3, window_bounds = array<i64: 128, 8>}, {transform_indices = @transform_4, window_bounds = array<i64: 48, 8>}]} {
    %c0 = arith.constant 0 : index
    %c0_0 = arith.constant 0 : index
    %0 = vector.load %arg1[%c0, %c0_0] : memref<48x13xf32, #tpu.memory_space<vmem>>, vector<48x13xf32>
    %1 = vector.extract_strided_slice %0 {offsets = [0, 9], sizes = [48, 4], strides = [1, 1]} : vector<48x13xf32> to vector<48x4xf32>
    %2 = arith.fptosi %1 : vector<48x4xf32> to vector<48x4xi32>
    %3 = tpu.iota {dimensions = array<i32: 1>} : vector<48x56xi32>
    %4 = vector.extract_strided_slice %2 {offsets = [0, 0], sizes = [48, 1], strides = [1, 1]} : vector<48x4xi32> to vector<48x1xi32>
    %5 = vector.broadcast %4 : vector<48x1xi32> to vector<48x56xi32>
    %6 = arith.cmpi eq, %3, %5 : vector<48x56xi32>
    %7 = vector.extract_strided_slice %2 {offsets = [0, 1], sizes = [48, 1], strides = [1, 1]} : vector<48x4xi32> to vector<48x1xi32>
    %8 = vector.broadcast %7 : vector<48x1xi32> to vector<48x56xi32>
    %9 = arith.cmpi eq, %3, %8 : vector<48x56xi32>
    %10 = arith.ori %6, %9 : vector<48x56xi1>
    %11 = vector.extract_strided_slice %2 {offsets = [0, 2], sizes = [48, 1], strides = [1, 1]} : vector<48x4xi32> to vector<48x1xi32>
    %12 = vector.broadcast %11 : vector<48x1xi32> to vector<48x56xi32>
    %13 = arith.cmpi eq, %3, %12 : vector<48x56xi32>
    %14 = arith.ori %10, %13 : vector<48x56xi1>
    %15 = vector.extract_strided_slice %2 {offsets = [0, 3], sizes = [48, 1], strides = [1, 1]} : vector<48x4xi32> to vector<48x1xi32>
    %16 = vector.broadcast %15 : vector<48x1xi32> to vector<48x56xi32>
    %17 = arith.cmpi eq, %3, %16 : vector<48x56xi32>
    %18 = arith.ori %14, %17 : vector<48x56xi1>
    %19 = arith.extui %18 : vector<48x56xi1> to vector<48x56xi32>
    %20 = arith.sitofp %19 : vector<48x56xi32> to vector<48x56xf32>
    %c0_1 = arith.constant 0 : index
    %c0_2 = arith.constant 0 : index
    %21 = vector.load %arg3[%c0_1, %c0_2] : memref<56x128xf32, #tpu.memory_space<vmem>>, vector<56x128xf32>
    %cst = arith.constant dense<0.000000e+00> : vector<48x128xf32>
    %22 = tpu.matmul %20, %21, %cst {dimension_numbers = #tpu.dot_dimension_numbers<[1], [0], [0], [1], [0, 0, 1, 1], [], []>} : vector<48x56xf32>, vector<56x128xf32>, vector<48x128xf32> -> vector<48x128xf32>
    %c0_3 = arith.constant 0 : index
    %c0_4 = arith.constant 0 : index
    %23 = vector.load %arg2[%c0_3, %c0_4] : memref<13x128xf32, #tpu.memory_space<vmem>>, vector<13x128xf32>
    %cst_5 = arith.constant dense<0.000000e+00> : vector<48x128xf32>
    %24 = tpu.matmul %0, %23, %cst_5 {dimension_numbers = #tpu.dot_dimension_numbers<[1], [0], [0], [1], [0, 0, 1, 1], [], []>} : vector<48x13xf32>, vector<13x128xf32>, vector<48x128xf32> -> vector<48x128xf32>
    %25 = arith.addf %22, %24 : vector<48x128xf32>
    %cst_6 = arith.constant 0.000000e+00 : f32
    %26 = vector.broadcast %cst_6 : f32 to vector<48x128xf32>
    %27 = arith.maximumf %25, %26 : vector<48x128xf32>
    %c0_7 = arith.constant 0 : index
    %c0_8 = arith.constant 0 : index
    %28 = vector.load %arg4[%c0_7, %c0_8] : memref<128x8xf32, #tpu.memory_space<vmem>>, vector<128x8xf32>
    %cst_9 = arith.constant dense<0.000000e+00> : vector<48x8xf32>
    %29 = tpu.matmul %27, %28, %cst_9 {dimension_numbers = #tpu.dot_dimension_numbers<[1], [0], [0], [1], [0, 0, 1, 1], [], []>} : vector<48x128xf32>, vector<128x8xf32>, vector<48x8xf32> -> vector<48x8xf32>
    %c0_10 = arith.constant 0 : index
    %c0_11 = arith.constant 0 : index
    %30 = vector.load %arg5[%c0_10, %c0_11] : memref<48x8xf32, #tpu.memory_space<vmem>>, vector<48x8xf32>
    tpu.vector_store %arg5[%c0_10, %c0_11], %29 {strides = array<i32>} : memref<48x8xf32, #tpu.memory_space<vmem>>, vector<48x8xf32>,
    return
  }
  func.func @transform_0(%arg0: i32) -> (i32, i32) {
    %c0_i32 = arith.constant 0 : i32
    %c0_i32_0 = arith.constant 0 : i32
    return %arg0, %c0_i32 : i32, i32
  }
  func.func @transform_1(%arg0: i32) -> (i32, i32) {
    %c0_i32 = arith.constant 0 : i32
    %c0_i32_0 = arith.constant 0 : i32
    %c0_i32_1 = arith.constant 0 : i32
    return %c0_i32, %c0_i32_0 : i32, i32
  }
  func.func @transform_2(%arg0: i32) -> (i32, i32) {
    %c0_i32 = arith.constant 0 : i32
    %c0_i32_0 = arith.constant 0 : i32
    %c0_i32_1 = arith.constant 0 : i32
    return %c0_i32, %c0_i32_0 : i32, i32
  }
  func.func @transform_3(%arg0: i32) -> (i32, i32) {
    %c0_i32 = arith.constant 0 : i32
    %c0_i32_0 = arith.constant 0 : i32
    %c0_i32_1 = arith.constant 0 : i32
    return %c0_i32, %c0_i32_0 : i32, i32
  }
  func.func @transform_4(%arg0: i32) -> (i32, i32) {
    %c0_i32 = arith.constant 0 : i32
    %c0_i32_0 = arith.constant 0 : i32
    return %arg0, %c0_i32 : i32, i32
  }
}

</mosaic_0001>

<llo_original>
// kernel: single_ltv_forward.1
$region0: #{single_ltv_forward.1}
  #allocation0 [shape = 'u32[]', space=smem, size = 0x4, offset = 0x4, fixed_abs, tag = 'smem constant byte address 0x4 - core index']
  #allocation1 [shape = 'u32[144,128]{1,0:T(1,128)}', space=vmem, size = 0x12000, scoped, tag = 'internal scratch']
  %s0 = inlined_call_operand.vmem [shape: f32[48,13], index: 0, kind: input, shape index: {}]
  %s1 = inlined_call_operand.vmem [shape: f32[13,128], index: 1, kind: input, shape index: {}]
  %s2 = inlined_call_operand.vmem [shape: f32[56,128], index: 2, kind: input, shape index: {}]
  %s3 = inlined_call_operand.vmem [shape: f32[128,8], index: 3, kind: input, shape index: {}]
  %s4 = inlined_call_operand.vmem [shape: f32[48,8], index: 4, kind: output, shape index: {}]
  %s5 = sld [smem:[#allocation0]]
  $region26: #{single_ltv_forward.1} parent=0
    _
  %s7 = ssub.s32 1, %s5
  %s8 = scalar_select 0, %s7, %s5
  // Predicated region
  $region2: #{single_ltv_forward.1} parent=0 // pred_check
    _
  $region3: #{single_ltv_forward.1} parent=0 // pred_check_branch
    %10 = sbr.rel (0) target = $region5
  $region4: #{single_ltv_forward.1} parent=0 // pred_region
    _
  $region5: #{single_ltv_forward.1} parent=0 // pred_fallthru
    _
  // Predicated region
  $region6: #{single_ltv_forward.1} parent=0 // pred_check
    _
  $region7: #{single_ltv_forward.1} parent=0 // pred_check_branch
    %12 = sbr.rel (0) target = $region9
  $region8: #{single_ltv_forward.1} parent=0 // pred_region
    _
  $region9: #{single_ltv_forward.1} parent=0 // pred_fallthru
    _
  // Predicated region
  $region10: #{single_ltv_forward.1} parent=0 // pred_check
    _
  $region11: #{single_ltv_forward.1} parent=0 // pred_check_branch
    %14 = sbr.rel (0) target = $region13
  $region12: #{single_ltv_forward.1} parent=0 // pred_region
    _
  $region13: #{single_ltv_forward.1} parent=0 // pred_fallthru
    _
  // Predicated region
  $region14: #{single_ltv_forward.1} parent=0 // pred_check
    _
  $region15: #{single_ltv_forward.1} parent=0 // pred_check_branch
    %16 = sbr.rel (0) target = $region17
  $region16: #{single_ltv_forward.1} parent=0 // pred_region
    _
  $region17: #{single_ltv_forward.1} parent=0 // pred_fallthru
    _
  %v17 = vld [vmem:[%s0] sm:$0xff]
  %v18 = vld [vmem:[%s0 + $0x8] sm:$0xff]
  %v19 = vld [vmem:[%s0 + $0x10] sm:$0xff]
  %v20 = vld [vmem:[%s0 + $0x18] sm:$0xff]
  %v21 = vld [vmem:[%s0 + $0x20] sm:$0xff]
  %v22 = vld [vmem:[%s0 + $0x28] sm:$0xff]
  %v23 = vcvt.f32.s32.to.zero.pseudo %v17
  %v24 = vcvt.f32.s32.to.zero.pseudo %v18
  %v25 = vcvt.f32.s32.to.zero.pseudo %v19
  %v26 = vcvt.f32.s32.to.zero.pseudo %v20
  %v27 = vcvt.f32.s32.to.zero.pseudo %v21
  %v28 = vcvt.f32.s32.to.zero.pseudo %v22
  %v29 = vlaneseq
  %v30 = vand.u32 %v29, 127
  %31 = vset.pattern.permute.xlu0 9
  %32 = vperm.xlu0 %31, %v23
  %v33 = vpop.permute.xlu0 %32
  %34 = vset.pattern.permute.xlu0 9
  %35 = vperm.xlu0 %34, %v24
  %v36 = vpop.permute.xlu0 %35
  %37 = vset.pattern.permute.xlu0 9
  %38 = vperm.xlu0 %37, %v25
  %v39 = vpop.permute.xlu0 %38
  %40 = vset.pattern.permute.xlu0 9
  %41 = vperm.xlu0 %40, %v26
  %v42 = vpop.permute.xlu0 %41
  %43 = vset.pattern.permute.xlu0 9
  %44 = vperm.xlu0 %43, %v27
  %v45 = vpop.permute.xlu0 %44
  %46 = vset.pattern.permute.xlu0 9
  %47 = vperm.xlu0 %46, %v28
  %v48 = vpop.permute.xlu0 %47
  %vm49 = vcmp.eq.s32.totalorder %v30, %v33
  %vm50 = vcmp.eq.s32.totalorder %v30, %v36
  %vm51 = vcmp.eq.s32.totalorder %v30, %v39
  %vm52 = vcmp.eq.s32.totalorder %v30, %v42
  %vm53 = vcmp.eq.s32.totalorder %v30, %v45
  %vm54 = vcmp.eq.s32.totalorder %v30, %v48
  %55 = vset.pattern.permute.xlu0 10
  %56 = vperm.xlu0 %55, %v23
  %v57 = vpop.permute.xlu0 %56
  %58 = vset.pattern.permute.xlu0 10
  %59 = vperm.xlu0 %58, %v24
  %v60 = vpop.permute.xlu0 %59
  %61 = vset.pattern.permute.xlu0 10
  %62 = vperm.xlu0 %61, %v25
  %v63 = vpop.permute.xlu0 %62
  %64 = vset.pattern.permute.xlu0 10
  %65 = vperm.xlu0 %64, %v26
  %v66 = vpop.permute.xlu0 %65
  %67 = vset.pattern.permute.xlu0 10
  %68 = vperm.xlu0 %67, %v27
  %v69 = vpop.permute.xlu0 %68
  %70 = vset.pattern.permute.xlu0 10
  %71 = vperm.xlu0 %70, %v28
  %v72 = vpop.permute.xlu0 %71
  %vm73 = vcmp.eq.s32.totalorder %v30, %v57
  %vm74 = vcmp.eq.s32.totalorder %v30, %v60
  %vm75 = vcmp.eq.s32.totalorder %v30, %v63
  %vm76 = vcmp.eq.s32.totalorder %v30, %v66
  %vm77 = vcmp.eq.s32.totalorder %v30, %v69
  %vm78 = vcmp.eq.s32.totalorder %v30, %v72
  %vm79 = vmor %vm49, %vm73
  %vm80 = vmor %vm50, %vm74
  %vm81 = vmor %vm51, %vm75
  %vm82 = vmor %vm52, %vm76
  %vm83 = vmor %vm53, %vm77
  %vm84 = vmor %vm54, %vm78
  %85 = vset.pattern.permute.xlu0 11
  %86 = vperm.xlu0 %85, %v23
  %v87 = vpop.permute.xlu0 %86
  %88 = vset.pattern.permute.xlu0 11
  %89 = vperm.xlu0 %88, %v24
  %v90 = vpop.permute.xlu0 %89
  %91 = vset.pattern.permute.xlu0 11
  %92 = vperm.xlu0 %91, %v25
  %v93 = vpop.permute.xlu0 %92
  %94 = vset.pattern.permute.xlu0 11
  %95 = vperm.xlu0 %94, %v26
  %v96 = vpop.permute.xlu0 %95
  %97 = vset.pattern.permute.xlu0 11
  %98 = vperm.xlu0 %97, %v27
  %v99 = vpop.permute.xlu0 %98
  %100 = vset.pattern.permute.xlu0 11
  %101 = vperm.xlu0 %100, %v28
  %v102 = vpop.permute.xlu0 %101
  %vm103 = vcmp.eq.s32.totalorder %v30, %v87
  %vm104 = vcmp.eq.s32.totalorder %v30, %v90
  %vm105 = vcmp.eq.s32.totalorder %v30, %v93
  %vm106 = vcmp.eq.s32.totalorder %v30, %v96
  %vm107 = vcmp.eq.s32.totalorder %v30, %v99
  %vm108 = vcmp.eq.s32.totalorder %v30, %v102
  %vm109 = vmor %vm79, %vm103
  %vm110 = vmor %vm80, %vm104
  %vm111 = vmor %vm81, %vm105
  %vm112 = vmor %vm82, %vm106
  %vm113 = vmor %vm83, %vm107
  %vm114 = vmor %vm84, %vm108
  %115 = vset.pattern.permute.xlu0 12
  %116 = vperm.xlu0 %115, %v23
  %v117 = vpop.permute.xlu0 %116
  %118 = vset.pattern.permute.xlu0 12
  %119 = vperm.xlu0 %118, %v24
  %v120 = vpop.permute.xlu0 %119
  %121 = vset.pattern.permute.xlu0 12
  %122 = vperm.xlu0 %121, %v25
  %v123 = vpop.permute.xlu0 %122
  %124 = vset.pattern.permute.xlu0 12
  %125 = vperm.xlu0 %124, %v26
  %v126 = vpop.permute.xlu0 %125
  %127 = vset.pattern.permute.xlu0 12
  %128 = vperm.xlu0 %127, %v27
  %v129 = vpop.permute.xlu0 %128
  %130 = vset.pattern.permute.xlu0 12
  %131 = vperm.xlu0 %130, %v28
  %v132 = vpop.permute.xlu0 %131
  %vm133 = vcmp.eq.s32.totalorder %v30, %v117
  %vm134 = vcmp.eq.s32.totalorder %v30, %v120
  %vm135 = vcmp.eq.s32.totalorder %v30, %v123
  %vm136 = vcmp.eq.s32.totalorder %v30, %v126
  %vm137 = vcmp.eq.s32.totalorder %v30, %v129
  %vm138 = vcmp.eq.s32.totalorder %v30, %v132
  %vm139 = vmor %vm109, %vm133
  %vm140 = vmor %vm110, %vm134
  %vm141 = vmor %vm111, %vm135
  %vm142 = vmor %vm112, %vm136
  %vm143 = vmor %vm113, %vm137
  %vm144 = vmor %vm114, %vm138
  %v145 = vsel %vm139, 1, 0
  %v146 = vsel %vm140, 1, 0
  %v147 = vsel %vm141, 1, 0
  %v148 = vsel %vm142, 1, 0
  %v149 = vsel %vm143, 1, 0
  %v150 = vsel %vm144, 1, 0
  %v151 = vcvt.s32.f32 %v145
  %v152 = vcvt.s32.f32 %v146
  %v153 = vcvt.s32.f32 %v147
  %v154 = vcvt.s32.f32 %v148
  %v155 = vcvt.s32.f32 %v149
  %v156 = vcvt.s32.f32 %v150
  %v157 = vld [vmem:[%s2] sm:$0xff]
  %v158 = vld [vmem:[%s2 + $0x8] sm:$0xff]
  %v159 = vld [vmem:[%s2 + $0x10] sm:$0xff]
  %v160 = vld [vmem:[%s2 + $0x18] sm:$0xff]
  %v161 = vld [vmem:[%s2 + $0x20] sm:$0xff]
  %v162 = vld [vmem:[%s2 + $0x28] sm:$0xff]
  %v163 = vld [vmem:[%s2 + $0x30] sm:$0xff]
  %v164 = vld [vmem:[%s1] sm:$0xff]
  %v165 = vld [vmem:[%s1 + $0x8] sm:$0x1f]
  %vm166 = vcmask 105472
  %v168 = vsel %vm166, %v17, 0
  %v171 = vsel %vm166, %v18, 0
  %v174 = vsel %vm166, %v19, 0
  %v177 = vsel %vm166, %v20, 0
  %v180 = vsel %vm166, %v21, 0
  %v183 = vsel %vm166, %v22, 0
  %vm185 = vcmask 1044480
  %v187 = vsel %vm185, %v165, 0
  %189 = vmatprep.subr.mxu0 0.0
  %190 = vmatpush1.msra.mxu0 %v164
  %191 = vmatprep.subr.mxu0 0.0
  %192 = vmatpush1.msra.mxu0 %v187
  %193 = vmatprep.subr.mxu0 0.0
  %194 = vmatpush1.msra.mxu0 0.0
  %195 = vmatprep.subr.mxu0 0.0
  %196 = vmatpush1.msra.mxu0 0.0
  %197 = vmatprep.subr.mxu0 0.0
  %198 = vmatpush1.msra.mxu0 0.0
  %199 = vmatprep.subr.mxu0 0.0
  %200 = vmatpush1.msra.mxu0 0.0
  %201 = vmatprep.subr.mxu0 0.0
  %202 = vmatpush1.msra.mxu0 0.0
  %203 = vmatprep.subr.mxu0 0.0
  %204 = vmatpush1.msra.mxu0 0.0
  %205 = vmatprep.subr.mxu0 0.0
  %206 = vmatpush1.msra.mxu0 0.0
  %207 = vmatprep.subr.mxu0 0.0
  %208 = vmatpush1.msra.mxu0 0.0
  %209 = vmatprep.subr.mxu0 0.0
  %210 = vmatpush1.msra.mxu0 0.0
  %211 = vmatprep.subr.mxu0 0.0
  %212 = vmatpush1.msra.mxu0 0.0
  %213 = vmatprep.subr.mxu0 0.0
  %214 = vmatpush1.msra.mxu0 0.0
  %215 = vmatprep.subr.mxu0 0.0
  %216 = vmatpush1.msra.mxu0 0.0
  %217 = vmatprep.subr.mxu0 0.0
  %218 = vmatpush1.msra.mxu0 0.0
  %219 = vmatprep.subr.mxu0 0.0
  %220 = vmatpush1.msra.mxu0 0.0
  %221 = vmatprep.subr.mxu0 0.0
  %222 = vmatpush1.msra.mxu0 0.0
  %223 = vmatprep.subr.mxu0 0.0
  %224 = vmatpush1.msra.mxu0 0.0
  %225 = vmatprep.subr.mxu0 0.0
  %226 = vmatpush1.msra.mxu0 0.0
  %227 = vmatprep.subr.mxu0 0.0
  %228 = vmatpush1.msra.mxu0 0.0
  %229 = vmatprep.subr.mxu0 0.0
  %230 = vmatpush1.msra.mxu0 0.0
  %231 = vmatprep.subr.mxu0 0.0
  %232 = vmatpush1.msra.mxu0 0.0
  %233 = vmatprep.subr.mxu0 0.0
  %234 = vmatpush1.msra.mxu0 0.0
  %235 = vmatprep.subr.mxu0 0.0
  %236 = vmatpush1.msra.mxu0 0.0
  %237 = vmatprep.subr.mxu0 0.0
  %238 = vmatpush1.msra.mxu0 0.0
  %239 = vmatprep.subr.mxu0 0.0
  %240 = vmatpush1.msra.mxu0 0.0
  %241 = vmatprep.subr.mxu0 0.0
  %242 = vmatpush1.msra.mxu0 0.0
  %243 = vmatprep.subr.mxu0 0.0
  %244 = vmatpush1.msra.mxu0 0.0
  %245 = vmatprep.subr.mxu0 0.0
  %246 = vmatpush1.msra.mxu0 0.0
  %247 = vmatprep.subr.mxu0 0.0
  %248 = vmatpush1.msra.mxu0 0.0
  %249 = vmatprep.subr.mxu0 0.0
  %250 = vmatpush1.msra.mxu0 0.0
  %251 = vmatprep.subr.mxu0 0.0
  %252 = vmatpush1.msra.mxu0 0.0
  %253 = vmatprep.mubr.f32.mxu0 0.0
  %254 = vmatmul.mubr.f32.gmra.mrb[0].mxu0 %v168
  %v255 = vpop.f32.mrb[0].mxu0
  %v256 = vadd.f32 0.0, %v255
  %v257 = vpop.f32.mrb[0].mxu0
  %258 = vmatprep.mubr.f32.mxu0 0.0
  %259 = vmatmul.mubr.f32.gmra.mrb[0].mxu0 %v171
  %v260 = vpop.f32.mrb[0].mxu0
  %v261 = vadd.f32 0.0, %v260
  %v262 = vpop.f32.mrb[0].mxu0
  %263 = vmatprep.mubr.f32.mxu0 0.0
  %264 = vmatmul.mubr.f32.gmra.mrb[0].mxu0 %v174
  %v265 = vpop.f32.mrb[0].mxu0
  %v266 = vadd.f32 0.0, %v265
  %v267 = vpop.f32.mrb[0].mxu0
  %268 = vmatprep.mubr.f32.mxu0 0.0
  %269 = vmatmul.mubr.f32.gmra.mrb[0].mxu0 %v177
  %v270 = vpop.f32.mrb[0].mxu0
  %v271 = vadd.f32 0.0, %v270
  %v272 = vpop.f32.mrb[0].mxu0
  %273 = vmatprep.mubr.f32.mxu0 0.0
  %274 = vmatmul.mubr.f32.gmra.mrb[0].mxu0 %v180
  %v275 = vpop.f32.mrb[0].mxu0
  %v276 = vadd.f32 0.0, %v275
  %v277 = vpop.f32.mrb[0].mxu0
  %278 = vmatprep.mubr.f32.mxu0 0.0
  %279 = vmatmul.mubr.f32.gmra.mrb[0].mxu0 %v183
  %v280 = vpop.f32.mrb[0].mxu0
  %v281 = vadd.f32 0.0, %v280
  %v282 = vpop.f32.mrb[0].mxu0
  %283 = vdwg.mxu0
  %vm284 = vcmask 457728
  %v286 = vsel %vm284, %v151, 0
  %v289 = vsel %vm284, %v152, 0
  %v292 = vsel %vm284, %v153, 0
  %v295 = vsel %vm284, %v154, 0
  %v298 = vsel %vm284, %v155, 0
  %v301 = vsel %vm284, %v156, 0
  %303 = vmatprep.subr.mxu0 0.0
  %304 = vmatpush1.msra.mxu0 %v157
  %305 = vmatprep.subr.mxu0 0.0
  %306 = vmatpush1.msra.mxu0 %v158
  %307 = vmatprep.subr.mxu0 0.0
  %308 = vmatpush1.msra.mxu0 %v159
  %309 = vmatprep.subr.mxu0 0.0
  %310 = vmatpush1.msra.mxu0 %v160
  %311 = vmatprep.subr.mxu0 0.0
  %312 = vmatpush1.msra.mxu0 %v161
  %313 = vmatprep.subr.mxu0 0.0
  %314 = vmatpush1.msra.mxu0 %v162
  %315 = vmatprep.subr.mxu0 0.0
  %316 = vmatpush1.msra.mxu0 %v163
  %317 = vmatprep.subr.mxu0 0.0
  %318 = vmatpush1.msra.mxu0 0.0
  %319 = vmatprep.subr.mxu0 0.0
  %320 = vmatpush1.msra.mxu0 0.0
  %321 = vmatprep.subr.mxu0 0.0
  %322 = vmatpush1.msra.mxu0 0.0
  %323 = vmatprep.subr.mxu0 0.0
  %324 = vmatpush1.msra.mxu0 0.0
  %325 = vmatprep.subr.mxu0 0.0
  %326 = vmatpush1.msra.mxu0 0.0
  %327 = vmatprep.subr.mxu0 0.0
  %328 = vmatpush1.msra.mxu0 0.0
  %329 = vmatprep.subr.mxu0 0.0
  %330 = vmatpush1.msra.mxu0 0.0
  %331 = vmatprep.subr.mxu0 0.0
  %332 = vmatpush1.msra.mxu0 0.0
  %333 = vmatprep.subr.mxu0 0.0
  %334 = vmatpush1.msra.mxu0 0.0
  %335 = vmatprep.subr.mxu0 0.0
  %336 = vmatpush1.msra.mxu0 0.0
  %337 = vmatprep.subr.mxu0 0.0
  %338 = vmatpush1.msra.mxu0 0.0
  %339 = vmatprep.subr.mxu0 0.0
  %340 = vmatpush1.msra.mxu0 0.0
  %341 = vmatprep.subr.mxu0 0.0
  %342 = vmatpush1.msra.mxu0 0.0
  %343 = vmatprep.subr.mxu0 0.0
  %344 = vmatpush1.msra.mxu0 0.0
  %345 = vmatprep.subr.mxu0 0.0
  %346 = vmatpush1.msra.mxu0 0.0
  %347 = vmatprep.subr.mxu0 0.0
  %348 = vmatpush1.msra.mxu0 0.0
  %349 = vmatprep.subr.mxu0 0.0
  %350 = vmatpush1.msra.mxu0 0.0
  %351 = vmatprep.subr.mxu0 0.0
  %352 = vmatpush1.msra.mxu0 0.0
  %353 = vmatprep.subr.mxu0 0.0
  %354 = vmatpush1.msra.mxu0 0.0
  %355 = vmatprep.subr.mxu0 0.0
  %356 = vmatpush1.msra.mxu0 0.0
  %357 = vmatprep.subr.mxu0 0.0
  %358 = vmatpush1.msra.mxu0 0.0
  %359 = vmatprep.subr.mxu0 0.0
  %360 = vmatpush1.msra.mxu0 0.0
  %361 = vmatprep.subr.mxu0 0.0
  %362 = vmatpush1.msra.mxu0 0.0
  %363 = vmatprep.subr.mxu0 0.0
  %364 = vmatpush1.msra.mxu0 0.0
  %365 = vmatprep.subr.mxu0 0.0
  %366 = vmatpush1.msra.mxu0 0.0
  %367 = vmatprep.mubr.f32.mxu0 0.0
  %368 = vmatmul.mubr.f32.gmra.mrb[0].mxu0 %v286
  %v369 = vpop.f32.mrb[0].mxu0
  %v370 = vadd.f32 %v256, %v369
  %v371 = vpop.f32.mrb[0].mxu0
  %372 = vmatprep.mubr.f32.mxu0 0.0
  %373 = vmatmul.mubr.f32.gmra.mrb[0].mxu0 %v289
  %v374 = vpop.f32.mrb[0].mxu0
  %v375 = vadd.f32 %v261, %v374
  %v376 = vpop.f32.mrb[0].mxu0
  %377 = vmatprep.mubr.f32.mxu0 0.0
  %378 = vmatmul.mubr.f32.gmra.mrb[0].mxu0 %v292
  %v379 = vpop.f32.mrb[0].mxu0
  %v380 = vadd.f32 %v266, %v379
  %v381 = vpop.f32.mrb[0].mxu0
  %382 = vmatprep.mubr.f32.mxu0 0.0
  %383 = vmatmul.mubr.f32.gmra.mrb[0].mxu0 %v295
  %v384 = vpop.f32.mrb[0].mxu0
  %v385 = vadd.f32 %v271, %v384
  %v386 = vpop.f32.mrb[0].mxu0
  %387 = vmatprep.mubr.f32.mxu0 0.0
  %388 = vmatmul.mubr.f32.gmra.mrb[0].mxu0 %v298
  %v389 = vpop.f32.mrb[0].mxu0
  %v390 = vadd.f32 %v276, %v389
  %v391 = vpop.f32.mrb[0].mxu0
  %392 = vmatprep.mubr.f32.mxu0 0.0
  %393 = vmatmul.mubr.f32.gmra.mrb[0].mxu0 %v301
  %v394 = vpop.f32.mrb[0].mxu0
  %v395 = vadd.f32 %v281, %v394
  %v396 = vpop.f32.mrb[0].mxu0
  %397 = vdwg.mxu0
  %v398 = vmax.f32 %v370, 0.0
  %v399 = vmax.f32 %v375, 0.0
  %v400 = vmax.f32 %v380, 0.0
  %v401 = vmax.f32 %v385, 0.0
  %v402 = vmax.f32 %v390, 0.0
  %v403 = vmax.f32 %v395, 0.0
  %v404 = vld [vmem:[%s3] sm:$0xff]
  %v405 = vld [vmem:[%s3 + $0x8] sm:$0xff]
  %v406 = vld [vmem:[%s3 + $0x10] sm:$0xff]
  %v407 = vld [vmem:[%s3 + $0x18] sm:$0xff]
  %v408 = vld [vmem:[%s3 + $0x20] sm:$0xff]
  %v409 = vld [vmem:[%s3 + $0x28] sm:$0xff]
  %v410 = vld [vmem:[%s3 + $0x30] sm:$0xff]
  %v411 = vld [vmem:[%s3 + $0x38] sm:$0xff]
  %v412 = vld [vmem:[%s3 + $0x40] sm:$0xff]
  %v413 = vld [vmem:[%s3 + $0x48] sm:$0xff]
  %v414 = vld [vmem:[%s3 + $0x50] sm:$0xff]
  %v415 = vld [vmem:[%s3 + $0x58] sm:$0xff]
  %v416 = vld [vmem:[%s3 + $0x60] sm:$0xff]
  %v417 = vld [vmem:[%s3 + $0x68] sm:$0xff]
  %v418 = vld [vmem:[%s3 + $0x70] sm:$0xff]
  %v419 = vld [vmem:[%s3 + $0x78] sm:$0xff]
  %420 = vmatprep.subr.mxu0 0.0
  %421 = vmatpush1.msra.mxu0 %v404
  %422 = vmatprep.subr.mxu0 0.0
  %423 = vmatpush1.msra.mxu0 %v405
  %424 = vmatprep.subr.mxu0 0.0
  %425 = vmatpush1.msra.mxu0 %v406
  %426 = vmatprep.subr.mxu0 0.0
  %427 = vmatpush1.msra.mxu0 %v407
  %428 = vmatprep.subr.mxu0 0.0
  %429 = vmatpush1.msra.mxu0 %v408
  %430 = vmatprep.subr.mxu0 0.0
  %431 = vmatpush1.msra.mxu0 %v409
  %432 = vmatprep.subr.mxu0 0.0
  %433 = vmatpush1.msra.mxu0 %v410
  %434 = vmatprep.subr.mxu0 0.0
  %435 = vmatpush1.msra.mxu0 %v411
  %436 = vmatprep.subr.mxu0 0.0
  %437 = vmatpush1.msra.mxu0 %v412
  %438 = vmatprep.subr.mxu0 0.0
  %439 = vmatpush1.msra.mxu0 %v413
  %440 = vmatprep.subr.mxu0 0.0
  %441 = vmatpush1.msra.mxu0 %v414
  %442 = vmatprep.subr.mxu0 0.0
  %443 = vmatpush1.msra.mxu0 %v415
  %444 = vmatprep.subr.mxu0 0.0
  %445 = vmatpush1.msra.mxu0 %v416
  %446 = vmatprep.subr.mxu0 0.0
  %447 = vmatpush1.msra.mxu0 %v417
  %448 = vmatprep.subr.mxu0 0.0
  %449 = vmatpush1.msra.mxu0 %v418
  %450 = vmatprep.subr.mxu0 0.0
  %451 = vmatpush1.msra.mxu0 %v419
  %452 = vmatprep.subr.mxu0 0.0
  %453 = vmatpush1.msra.mxu0 0.0
  %454 = vmatprep.subr.mxu0 0.0
  %455 = vmatpush1.msra.mxu0 0.0
  %456 = vmatprep.subr.mxu0 0.0
  %457 = vmatpush1.msra.mxu0 0.0
  %458 = vmatprep.subr.mxu0 0.0
  %459 = vmatpush1.msra.mxu0 0.0
  %460 = vmatprep.subr.mxu0 0.0
  %461 = vmatpush1.msra.mxu0 0.0
  %462 = vmatprep.subr.mxu0 0.0
  %463 = vmatpush1.msra.mxu0 0.0
  %464 = vmatprep.subr.mxu0 0.0
  %465 = vmatpush1.msra.mxu0 0.0
  %466 = vmatprep.subr.mxu0 0.0
  %467 = vmatpush1.msra.mxu0 0.0
  %468 = vmatprep.subr.mxu0 0.0
  %469 = vmatpush1.msra.mxu0 0.0
  %470 = vmatprep.subr.mxu0 0.0
  %471 = vmatpush1.msra.mxu0 0.0
  %472 = vmatprep.subr.mxu0 0.0
  %473 = vmatpush1.msra.mxu0 0.0
  %474 = vmatprep.subr.mxu0 0.0
  %475 = vmatpush1.msra.mxu0 0.0
  %476 = vmatprep.subr.mxu0 0.0
  %477 = vmatpush1.msra.mxu0 0.0
  %478 = vmatprep.subr.mxu0 0.0
  %479 = vmatpush1.msra.mxu0 0.0
  %480 = vmatprep.subr.mxu0 0.0
  %481 = vmatpush1.msra.mxu0 0.0
  %482 = vmatprep.subr.mxu0 0.0
  %483 = vmatpush1.msra.mxu0 0.0
  %484 = vmatprep.mubr.f32.mxu0 0.0
  %485 = vmatmul.mubr.f32.gmra.mrb[0].mxu0 %v398
  %v486 = vpop.f32.mrb[0].mxu0
  %v487 = vadd.f32 0.0, %v486
  %v488 = vpop.f32.mrb[0].mxu0
  %489 = vmatprep.mubr.f32.mxu0 0.0
  %490 = vmatmul.mubr.f32.gmra.mrb[0].mxu0 %v399
  %v491 = vpop.f32.mrb[0].mxu0
  %v492 = vadd.f32 0.0, %v491
  %v493 = vpop.f32.mrb[0].mxu0
  %494 = vmatprep.mubr.f32.mxu0 0.0
  %495 = vmatmul.mubr.f32.gmra.mrb[0].mxu0 %v400
  %v496 = vpop.f32.mrb[0].mxu0
  %v497 = vadd.f32 0.0, %v496
  %v498 = vpop.f32.mrb[0].mxu0
  %499 = vmatprep.mubr.f32.mxu0 0.0
  %500 = vmatmul.mubr.f32.gmra.mrb[0].mxu0 %v401
  %v501 = vpop.f32.mrb[0].mxu0
  %v502 = vadd.f32 0.0, %v501
  %v503 = vpop.f32.mrb[0].mxu0
  %504 = vmatprep.mubr.f32.mxu0 0.0
  %505 = vmatmul.mubr.f32.gmra.mrb[0].mxu0 %v402
  %v506 = vpop.f32.mrb[0].mxu0
  %v507 = vadd.f32 0.0, %v506
  %v508 = vpop.f32.mrb[0].mxu0
  %509 = vmatprep.mubr.f32.mxu0 0.0
  %510 = vmatmul.mubr.f32.gmra.mrb[0].mxu0 %v403
  %v511 = vpop.f32.mrb[0].mxu0
  %v512 = vadd.f32 0.0, %v511
  %v513 = vpop.f32.mrb[0].mxu0
  %514 = vdwg.mxu0
  %vm515 = vcmask 64512
  %516 = vst.msk [vmem:[%s4] sm:$0xff] %vm515, %v487
  %517 = vst.msk [vmem:[%s4 + $0x8] sm:$0xff] %vm515, %v492
  %518 = vst.msk [vmem:[%s4 + $0x10] sm:$0xff] %vm515, %v497
  %519 = vst.msk [vmem:[%s4 + $0x18] sm:$0xff] %vm515, %v502
  %520 = vst.msk [vmem:[%s4 + $0x20] sm:$0xff] %vm515, %v507
  %521 = vst.msk [vmem:[%s4 + $0x28] sm:$0xff] %vm515, %v512
  // Predicated region
  $region18: #{single_ltv_forward.1} parent=0 // pred_check
    _
  $region19: #{single_ltv_forward.1} parent=0 // pred_check_branch
    %523 = sbr.rel (0) target = $region21
  $region20: #{single_ltv_forward.1} parent=0 // pred_region
    _
  $region21: #{single_ltv_forward.1} parent=0 // pred_fallthru
    _
  // Predicated region
  $region22: #{single_ltv_forward.1} parent=0 // pred_check
    _
  $region23: #{single_ltv_forward.1} parent=0 // pred_check_branch
    %525 = sbr.rel (0) target = $region25
  $region24: #{single_ltv_forward.1} parent=0 // pred_region
    _
  $region25: #{single_ltv_forward.1} parent=0 // pred_fallthru
    _

</llo_original>
